<compile_context>
chip_gen: v7x
topology: tpu7x:2x2x1
jax: 0.10.0
libtpu: 0.0.40
codegen_flags: <defaults>
</compile_context>

<pallas_src>
import jax
import jax.numpy as jnp
from jax.experimental import pallas as pl
from jax.experimental.pallas import tpu as pltpu

IN_DIM = 20
HID_DIM = 400
OUT_DIM = 784
OUT_PAD = 1024   # 784 padded to 8*128: lane-aligned and splits evenly into 2 tiles
TN = 512         # output-feature tile width (multiple of 128) -> grid=(2,)


def decoder_kernel(z_ref, w3_ref, b3_ref, w4_ref, b4_ref, out_ref):
    # fc3: (B,20) @ (20,400) on the MXU with f32 accumulation; bias+ReLU in f32.
    h = jnp.dot(z_ref[...], w3_ref[...], preferred_element_type=jnp.float32)
    h = jnp.maximum(h + b3_ref[...], 0.0)
    # fc4 for this 512-wide output tile: bf16 operands, f32 accumulation.
    o = jnp.dot(h.astype(jnp.bfloat16), w4_ref[...],
                preferred_element_type=jnp.float32)
    out_ref[...] = jax.nn.sigmoid(o + b4_ref[...]).astype(out_ref.dtype)


def init_params(key):
    """PyTorch-layout f32 params: nn.Linear default U(-1/sqrt(fan_in), +1/sqrt(fan_in))."""
    k1, k2, k3, k4 = jax.random.split(key, 4)
    bound3 = 1.0 / float(jnp.sqrt(jnp.float32(IN_DIM)))
    bound4 = 1.0 / float(jnp.sqrt(jnp.float32(HID_DIM)))
    w3 = jax.random.uniform(k1, (HID_DIM, IN_DIM), jnp.float32, -bound3, bound3)   # (400, 20)
    b3 = jax.random.uniform(k2, (HID_DIM,), jnp.float32, -bound3, bound3)          # (400,)
    w4 = jax.random.uniform(k3, (OUT_DIM, HID_DIM), jnp.float32, -bound4, bound4)  # (784, 400)
    b4 = jax.random.uniform(k4, (OUT_DIM,), jnp.float32, -bound4, bound4)          # (784,)
    return w3, b3, w4, b4


def prepare_params(w3, b3, w4, b4):
    """PyTorch-layout f32 params -> kernel layout (done once at init time):
       W transposed to (in, out), cast to bf16, W4/b4 zero-padded to OUT_PAD cols."""
    w3_t = jnp.asarray(w3, jnp.float32).T.astype(jnp.bfloat16)                  # (20, 400) bf16
    b3_r = jnp.asarray(b3, jnp.float32).reshape(1, HID_DIM)                     # (1, 400)  f32
    w4_t = jnp.asarray(w4, jnp.float32).T.astype(jnp.bfloat16)                  # (400, 784) bf16
    w4_p = jnp.zeros((HID_DIM, OUT_PAD), jnp.bfloat16).at[:, :OUT_DIM].set(w4_t)
    b4_p = jnp.zeros((1, OUT_PAD), jnp.float32).at[0, :OUT_DIM].set(
        jnp.asarray(b4, jnp.float32))
    return w3_t, b3_r, w4_p, b4_p


@jax.jit
def decoder_forward(z, w3_t, b3_r, w4_p, b4_p):
    """z: (B, 20) f32. Returns (B, 784) f32 = sigmoid(relu(z W3^T + b3) W4^T + b4)."""
    B = z.shape[0]
    z_bf = z.astype(jnp.bfloat16)

    flops = 2 * B * (IN_DIM * HID_DIM + HID_DIM * OUT_PAD)
    bytes_accessed = (z_bf.size * 2 + w3_t.size * 2 + b3_r.size * 4
                      + w4_p.size * 2 + b4_p.size * 4 + B * OUT_PAD * 4)

    out = pl.pallas_call(
        decoder_kernel,
        out_shape=jax.ShapeDtypeStruct((B, OUT_PAD), jnp.float32),
        grid=(OUT_PAD // TN,),
        in_specs=[
            pl.BlockSpec((B, IN_DIM), lambda j: (0, 0)),        # z     resident
            pl.BlockSpec((IN_DIM, HID_DIM), lambda j: (0, 0)),  # W3^T  resident
            pl.BlockSpec((1, HID_DIM), lambda j: (0, 0)),       # b3    resident
            pl.BlockSpec((HID_DIM, TN), lambda j: (0, j)),      # W4^T  N-tile
            pl.BlockSpec((1, TN), lambda j: (0, j)),            # b4    N-tile
        ],
        out_specs=pl.BlockSpec((B, TN), lambda j: (0, j)),      # lane-dense 512-wide stores
        compiler_params=pltpu.CompilerParams(
            dimension_semantics=("parallel",),                  # both v7x TCs can take a tile
        ),
        cost_estimate=pl.CostEstimate(
            flops=flops,
            transcendentals=B * OUT_PAD,                        # sigmoid
            bytes_accessed=bytes_accessed,
        ),
    )(z_bf, w3_t, b3_r, w4_p, b4_p)
    return out[:, :OUT_DIM]


if __name__ == "__main__":
    key = jax.random.PRNGKey(0)
    kz, kp = jax.random.split(key)

    B = 8  # small batch; for real workloads batch many samples per call to amortize weight DMA
    z = jax.random.normal(kz, (B, IN_DIM), jnp.float32)
    w3, b3, w4, b4 = init_params(kp)
    kernel_params = prepare_params(w3, b3, w4, b4)

    out = decoder_forward(z, *kernel_params)
    jax.block_until_ready(out)

    # Reference in plain JAX with the original f32 PyTorch-layout weights.
    # Kernel uses bf16 weights/activations for the matmuls (f32 accumulation),
    # so tolerance is loosened accordingly.
    ref = jax.nn.sigmoid(jnp.maximum(z @ w3.T + b3, 0.0) @ w4.T + b4)
    assert out.shape == (B, OUT_DIM)
    assert jnp.allclose(out, ref, atol=5e-3, rtol=0.0), float(jnp.max(jnp.abs(out - ref)))

    print("KERNEL_OK")
</pallas_src>

<mosaic_0001>
module attributes {stable_mosaic.version = 11 : i64} {
  func.func @decoder_kernel(%arg0: i32, %arg1: memref<8x20xbf16, #tpu.memory_space<vmem>>, %arg2: memref<20x400xbf16, #tpu.memory_space<vmem>>, %arg3: memref<1x400xf32, #tpu.memory_space<vmem>>, %arg4: memref<400x512xbf16, #tpu.memory_space<vmem>>, %arg5: memref<1x512xf32, #tpu.memory_space<vmem>>, %arg6: memref<8x512xf32, #tpu.memory_space<vmem>>) attributes {dimension_semantics = [#tpu.dimension_semantics<parallel>], iteration_bounds = array<i64: 2>, scalar_prefetch = 0 : i64, scratch_operands = 0 : i64, tpu.core_type = #tpu.core_type<tc>, window_params = [{pipeline_mode = #tpu.pipeline_mode<synchronous>, transform_indices = @transform_0, window_bounds = array<i64: 8, 20>}, {pipeline_mode = #tpu.pipeline_mode<synchronous>, transform_indices = @transform_1, window_bounds = array<i64: 20, 400>}, {pipeline_mode = #tpu.pipeline_mode<synchronous>, transform_indices = @transform_2, window_bounds = array<i64: 1, 400>}, {transform_indices = @transform_3, window_bounds = array<i64: 400, 512>}, {transform_indices = @transform_4, window_bounds = array<i64: 1, 512>}, {transform_indices = @transform_5, window_bounds = array<i64: 8, 512>}]} {
    %c0 = arith.constant 0 : index
    %c0_0 = arith.constant 0 : index
    %0 = vector.load %arg1[%c0, %c0_0] : memref<8x20xbf16, #tpu.memory_space<vmem>>, vector<8x20xbf16>
    %c0_1 = arith.constant 0 : index
    %c0_2 = arith.constant 0 : index
    %1 = vector.load %arg2[%c0_1, %c0_2] : memref<20x400xbf16, #tpu.memory_space<vmem>>, vector<20x400xbf16>
    %cst = arith.constant dense<0.000000e+00> : vector<8x400xf32>
    %2 = tpu.matmul %0, %1, %cst {dimension_numbers = #tpu.dot_dimension_numbers<[1], [0], [0], [1], [0, 0, 1, 1], [], []>} : vector<8x20xbf16>, vector<20x400xbf16>, vector<8x400xf32> -> vector<8x400xf32>
    %c0_3 = arith.constant 0 : index
    %c0_4 = arith.constant 0 : index
    %3 = vector.load %arg3[%c0_3, %c0_4] : memref<1x400xf32, #tpu.memory_space<vmem>>, vector<1x400xf32>
    %4 = vector.broadcast %3 : vector<1x400xf32> to vector<8x400xf32>
    %5 = arith.addf %2, %4 : vector<8x400xf32>
    %cst_5 = arith.constant 0.000000e+00 : f32
    %6 = vector.broadcast %cst_5 : f32 to vector<8x400xf32>
    %7 = arith.maximumf %5, %6 : vector<8x400xf32>
    %8 = arith.truncf %7 : vector<8x400xf32> to vector<8x400xbf16>
    %c0_6 = arith.constant 0 : index
    %c0_7 = arith.constant 0 : index
    %9 = vector.load %arg4[%c0_6, %c0_7] : memref<400x512xbf16, #tpu.memory_space<vmem>>, vector<400x512xbf16>
    %cst_8 = arith.constant dense<0.000000e+00> : vector<8x512xf32>
    %10 = tpu.matmul %8, %9, %cst_8 {dimension_numbers = #tpu.dot_dimension_numbers<[1], [0], [0], [1], [0, 0, 1, 1], [], []>} : vector<8x400xbf16>, vector<400x512xbf16>, vector<8x512xf32> -> vector<8x512xf32>
    %c0_9 = arith.constant 0 : index
    %c0_10 = arith.constant 0 : index
    %11 = vector.load %arg5[%c0_9, %c0_10] : memref<1x512xf32, #tpu.memory_space<vmem>>, vector<1x512xf32>
    %12 = vector.broadcast %11 : vector<1x512xf32> to vector<8x512xf32>
    %13 = arith.addf %10, %12 : vector<8x512xf32>
    %14 = arith.negf %13 : vector<8x512xf32>
    %15 = math.exp %14 : vector<8x512xf32>
    %cst_11 = arith.constant 1.000000e+00 : f32
    %16 = vector.broadcast %cst_11 : f32 to vector<8x512xf32>
    %17 = arith.addf %16, %15 : vector<8x512xf32>
    %18 = arith.divf %16, %17 : vector<8x512xf32>
    %c0_12 = arith.constant 0 : index
    %c0_13 = arith.constant 0 : index
    %19 = vector.load %arg6[%c0_12, %c0_13] : memref<8x512xf32, #tpu.memory_space<vmem>>, vector<8x512xf32>
    tpu.vector_store %arg6[%c0_12, %c0_13], %18 {strides = array<i32>} : memref<8x512xf32, #tpu.memory_space<vmem>>, vector<8x512xf32>,
    return
  }
  func.func @transform_0(%arg0: i32) -> (i32, i32) {
    %c0_i32 = arith.constant 0 : i32
    %c0_i32_0 = arith.constant 0 : i32
    %c0_i32_1 = arith.constant 0 : i32
    return %c0_i32, %c0_i32_0 : i32, i32
  }
  func.func @transform_1(%arg0: i32) -> (i32, i32) {
    %c0_i32 = arith.constant 0 : i32
    %c0_i32_0 = arith.constant 0 : i32
    %c0_i32_1 = arith.constant 0 : i32
    return %c0_i32, %c0_i32_0 : i32, i32
  }
  func.func @transform_2(%arg0: i32) -> (i32, i32) {
    %c0_i32 = arith.constant 0 : i32
    %c0_i32_0 = arith.constant 0 : i32
    %c0_i32_1 = arith.constant 0 : i32
    return %c0_i32, %c0_i32_0 : i32, i32
  }
  func.func @transform_3(%arg0: i32) -> (i32, i32) {
    %c0_i32 = arith.constant 0 : i32
    %c0_i32_0 = arith.constant 0 : i32
    return %c0_i32, %arg0 : i32, i32
  }
  func.func @transform_4(%arg0: i32) -> (i32, i32) {
    %c0_i32 = arith.constant 0 : i32
    %c0_i32_0 = arith.constant 0 : i32
    return %c0_i32, %arg0 : i32, i32
  }
  func.func @transform_5(%arg0: i32) -> (i32, i32) {
    %c0_i32 = arith.constant 0 : i32
    %c0_i32_0 = arith.constant 0 : i32
    return %c0_i32, %arg0 : i32, i32
  }
}

</mosaic_0001>

<llo_original>
// kernel: decoder_forward.1
$region0: #{decoder_forward.1}
  #allocation0 [shape = 'u32[]', space=smem, size = 0x4, offset = 0x4, fixed_abs, tag = 'smem constant byte address 0x4 - core index']
  #allocation1 [shape = 'u32[144,128]{1,0:T(1,128)}', space=vmem, size = 0x12000, scoped, tag = 'internal scratch']
  %s0 = inlined_call_operand.vmem [shape: bf16[8,20], index: 0, kind: input, shape index: {}]
  %s1 = inlined_call_operand.hbm [shape: bf16[20,400], index: 1, kind: input, shape index: {}]
  %s2 = inlined_call_operand.vmem [shape: f32[1,400], index: 2, kind: input, shape index: {}]
  %s3 = inlined_call_operand.hbm [shape: bf16[400,1024], index: 3, kind: input, shape index: {}]
  %s4 = inlined_call_operand.vmem [shape: f32[1,1024], index: 4, kind: input, shape index: {}]
  %s5 = inlined_call_operand.vmem [shape: f32[8,1024], index: 5, kind: output, shape index: {}]
  %s6 = sld [smem:[#allocation0]]
  $region61: #{decoder_forward.1} parent=0
    _
  %s8 = ssub.s32 1, %s6
  %s9 = scalar_select 0, %s8, %s6
  $region1: #{decoder_forward.1} parent=0
    #allocation2 [shape = 'u8[24576]{0}', space=vmem, size = 0x6000, scoped, tag = 'input window, operand 1, single buffered']
    #allocation3 [shape = 's32[2]{0}', space=sflag, size = 0x8, scoped, tag = 'scoped memory for decoder_forward.1']
    #allocation4 [shape = 'u8[819200]{0}', space=vmem, size = 0xc8000, scoped, tag = 'input window, operand 3']
    #allocation5 [shape = 's32[2]{0}', space=sflag, size = 0x8, scoped, tag = 'scoped memory for decoder_forward.1']
    %10 = vsyncpa [#allocation3], 0
    %11 = vsyncpa [#allocation5], 0
    %s12 = scalar_lea.sflag [#allocation5], 1
    %13 = vsyncpa %s12, 0
    loop: start=0, step=1, limit=4
    $region2: #{decoder_forward.1} parent=1 // loop_pre_header
      _
    $region3: #{decoder_forward.1} parent=1 // loop_header
      %s15 = sphi 0, %s19
      %p16 = scmp.ge.s32.totalorder %s15, 4
      %s23 = sphi 0, %s23
      %s25 = sphi 0, %s23
      %s26 = sphi 0, %s25
      %s40 = sphi 0, %s26
      %s44 = sphi 0, %s44
      %s46 = sphi 0, %s44
      %s47 = sphi 0, %s46
      %s61 = sphi 0, %s47
      %s65 = sphi 0, %s65
      %s67 = sphi 0, %s65
      %s68 = sphi 0, %s67
      %s82 = sphi 0, %s68
      %s88 = sphi 0, %s90
      %s91 = sphi 0, %s88
      %s92 = sphi 0, %s91
      %s108 = sphi 0, %s92
      %s114 = sphi 0, %s116
      %s117 = sphi 0, %s114
      %s118 = sphi 0, %s117
      %s134 = sphi 0, %s118
      %s140 = sphi 0, %s142
      %s143 = sphi 0, %s140
      %s144 = sphi 0, %s143
      %s160 = sphi 0, %s144
    $region4: #{decoder_forward.1} parent=1 // loop_header_branch
      %18 = sbr.rel (%p16) target = $region8
    $region5: #{decoder_forward.1} parent=1 // loop_body
      %s20 = ssub.s32 %s15, 1
      %s21 = ssub.s32 %s15, 2
      %s22 = sadd.s32 %s15, 1
      %s24 = sadd.s32 %s23, 1
      %p27 = scmp.eq.s32.totalorder %s15, 1
      %p28 = scmp.ne.s32.totalorder %s23, %s25
      %p29 = scmp.eq.s32.totalorder %s15, 0
      %p30 = por %p28, %p29
      %p31 = scmp.ne.s32.totalorder %s23, %s25
      %p32 = scmp.eq.s32.totalorder %s20, 1
      %p33 = por %p31, %p32
      %p34 = scmp.ne.s32.totalorder %s25, %s26
      %p35 = scmp.eq.s32.totalorder %s20, 0
      %p36 = por %p34, %p35
      %p37 = scmp.ne.s32.totalorder %s25, %s26
      %p38 = scmp.eq.s32.totalorder %s21, 1
      %p39 = por %p37, %p38
      %p41 = scmp.ne.s32.totalorder %s26, %s40
      %p42 = scmp.eq.s32.totalorder %s21, 0
      %p43 = por %p41, %p42
      %s45 = sadd.s32 %s44, 1
      %p48 = scmp.eq.s32.totalorder %s15, 1
      %p49 = scmp.ne.s32.totalorder %s44, %s46
      %p50 = scmp.eq.s32.totalorder %s15, 0
      %p51 = por %p49, %p50
      %p52 = scmp.ne.s32.totalorder %s44, %s46
      %p53 = scmp.eq.s32.totalorder %s20, 1
      %p54 = por %p52, %p53
      %p55 = scmp.ne.s32.totalorder %s46, %s47
      %p56 = scmp.eq.s32.totalorder %s20, 0
      %p57 = por %p55, %p56
      %p58 = scmp.ne.s32.totalorder %s46, %s47
      %p59 = scmp.eq.s32.totalorder %s21, 1
      %p60 = por %p58, %p59
      %p62 = scmp.ne.s32.totalorder %s47, %s61
      %p63 = scmp.eq.s32.totalorder %s21, 0
      %p64 = por %p62, %p63
      %s66 = sadd.s32 %s65, 1
      %p69 = scmp.eq.s32.totalorder %s15, 1
      %p70 = scmp.ne.s32.totalorder %s65, %s67
      %p71 = scmp.eq.s32.totalorder %s15, 0
      %p72 = por %p70, %p71
      %p73 = scmp.ne.s32.totalorder %s65, %s67
      %p74 = scmp.eq.s32.totalorder %s20, 1
      %p75 = por %p73, %p74
      %p76 = scmp.ne.s32.totalorder %s67, %s68
      %p77 = scmp.eq.s32.totalorder %s20, 0
      %p78 = por %p76, %p77
      %p79 = scmp.ne.s32.totalorder %s67, %s68
      %p80 = scmp.eq.s32.totalorder %s21, 1
      %p81 = por %p79, %p80
      %p83 = scmp.ne.s32.totalorder %s68, %s82
      %p84 = scmp.eq.s32.totalorder %s21, 0
      %p85 = por %p83, %p84
      %s86 = ssub.s32 %s15, %s22
      %p87 = scmp.eq.s32.totalorder %s86, 0
      %s89 = sadd.s32 %s88, 1
      %s90 = scalar_select %p87, %s88, %s89
      %p93 = pneg %p87
      %p94 = scmp.eq.s32.totalorder %s15, 1
      %p95 = por %p93, %p94
      %p96 = scmp.ne.s32.totalorder %s88, %s91
      %p97 = scmp.eq.s32.totalorder %s15, 0
      %p98 = por %p96, %p97
      %p99 = scmp.ne.s32.totalorder %s88, %s91
      %p100 = scmp.eq.s32.totalorder %s20, 1
      %p101 = por %p99, %p100
      %p102 = scmp.ne.s32.totalorder %s91, %s92
      %p103 = scmp.eq.s32.totalorder %s20, 0
      %p104 = por %p102, %p103
      %p105 = scmp.ne.s32.totalorder %s91, %s92
      %p106 = scmp.eq.s32.totalorder %s21, 1
      %p107 = por %p105, %p106
      %p109 = scmp.ne.s32.totalorder %s92, %s108
      %p110 = scmp.eq.s32.totalorder %s21, 0
      %p111 = por %p109, %p110
      %s112 = ssub.s32 %s15, %s22
      %p113 = scmp.eq.s32.totalorder %s112, 0
      %s115 = sadd.s32 %s114, 1
      %s116 = scalar_select %p113, %s114, %s115
      %p119 = pneg %p113
      %p120 = scmp.eq.s32.totalorder %s15, 1
      %p121 = por %p119, %p120
      %p122 = scmp.ne.s32.totalorder %s114, %s117
      %p123 = scmp.eq.s32.totalorder %s15, 0
      %p124 = por %p122, %p123
      %p125 = scmp.ne.s32.totalorder %s114, %s117
      %p126 = scmp.eq.s32.totalorder %s20, 1
      %p127 = por %p125, %p126
      %p128 = scmp.ne.s32.totalorder %s117, %s118
      %p129 = scmp.eq.s32.totalorder %s20, 0
      %p130 = por %p128, %p129
      %p131 = scmp.ne.s32.totalorder %s117, %s118
      %p132 = scmp.eq.s32.totalorder %s21, 1
      %p133 = por %p131, %p132
      %p135 = scmp.ne.s32.totalorder %s118, %s134
      %p136 = scmp.eq.s32.totalorder %s21, 0
      %p137 = por %p135, %p136
      %s138 = ssub.s32 %s15, %s22
      %p139 = scmp.eq.s32.totalorder %s138, 0
      %s141 = sadd.s32 %s140, 1
      %s142 = scalar_select %p139, %s140, %s141
      %p145 = pneg %p139
      %p146 = scmp.eq.s32.totalorder %s15, 1
      %p147 = por %p145, %p146
      %p148 = scmp.ne.s32.totalorder %s140, %s143
      %p149 = scmp.eq.s32.totalorder %s15, 0
      %p150 = por %p148, %p149
      %p151 = scmp.ne.s32.totalorder %s140, %s143
      %p152 = scmp.eq.s32.totalorder %s20, 1
      %p153 = por %p151, %p152
      %p154 = scmp.ne.s32.totalorder %s143, %s144
      %p155 = scmp.eq.s32.totalorder %s20, 0
      %p156 = por %p154, %p155
      %p157 = scmp.ne.s32.totalorder %s143, %s144
      %p158 = scmp.eq.s32.totalorder %s21, 1
      %p159 = por %p157, %p158
      %p161 = scmp.ne.s32.totalorder %s144, %s160
      %p162 = scmp.eq.s32.totalorder %s21, 0
      %p163 = por %p161, %p162
      %p164 = scmp.le.s32.totalorder 1, %s15
      %p165 = scmp.lt.s32.totalorder %s15, 3
      %p166 = pnand %p164, %p165
      %p167 = pneg %p166
      // Predicated region
      $region9: #{decoder_forward.1} parent=5 // pred_check
        _
      $region10: #{decoder_forward.1} parent=5 // pred_check_branch
        %169 = sbr.rel (%p166) target = $region12
      $region11: #{decoder_forward.1} parent=5 // pred_region
        %s170 = ssub.s32 %s15, 1
        // Predicated region
        $region13: #{decoder_forward.1} parent=11 // pred_check
          %p171 = pneg %p36
        $region14: #{decoder_forward.1} parent=11 // pred_check_branch
          %173 = sbr.rel (%p171) target = $region16
        $region15: #{decoder_forward.1} parent=11 // pred_region
          _
        $region16: #{decoder_forward.1} parent=11 // pred_fallthru
          _
        // Predicated region
        $region17: #{decoder_forward.1} parent=11 // pred_check
          %p174 = pneg %p57
        $region18: #{decoder_forward.1} parent=11 // pred_check_branch
          %176 = sbr.rel (%p174) target = $region20
        $region19: #{decoder_forward.1} parent=11 // pred_region
          %s178 = ssub.s32 768, 768
          %179 = vsyncadd [#allocation3], %s178
          %s180 = sshll.u32 [#allocation2], 4
          %s181 = int_to_ptr.vmem [resolvable:$true] %s180
          %186 = dma.hbm_to_vmem [thread:$0]  %s1, 768, %s181, [#allocation3], 256, 256, 16
        $region20: #{decoder_forward.1} parent=11 // pred_fallthru
          _
        // Predicated region
        $region21: #{decoder_forward.1} parent=11 // pred_check
          %p187 = pneg %p78
        $region22: #{decoder_forward.1} parent=11 // pred_check_branch
          %189 = sbr.rel (%p187) target = $region24
        $region23: #{decoder_forward.1} parent=11 // pred_region
          _
        $region24: #{decoder_forward.1} parent=11 // pred_fallthru
          _
      $region12: #{decoder_forward.1} parent=5 // pred_fallthru
        _
      %p190 = scmp.lt.s32.totalorder %s15, 2
      // Predicated region
      $region25: #{decoder_forward.1} parent=5 // pred_check
        %p191 = pneg %p190
      $region26: #{decoder_forward.1} parent=5 // pred_check_branch
        %193 = sbr.rel (%p191) target = $region28
      $region27: #{decoder_forward.1} parent=5 // pred_region
        // Predicated region
        $region29: #{decoder_forward.1} parent=27 // pred_check
          %p194 = pneg %p98
        $region30: #{decoder_forward.1} parent=27 // pred_check_branch
          %196 = sbr.rel (%p194) target = $region32
        $region31: #{decoder_forward.1} parent=27 // pred_region
          %s197 = sand.u32 %s88, 1
          %s198 = scalar_lea.sflag [#allocation5], %s197
          %s199 = sand.u32 %s88, 1
          %s200 = smul.addr %s199, 800
          %s201 = scalar_lea.vmem [#allocation4], %s200
          %s202 = smul.u32 4, %s15
          %s204 = ssub.s32 12800, 12800
          %205 = vsyncadd %s198, %s204
          %s206 = smul.addr %s202, 64
          %s207 = scalar_lea.hbm %s3, %s206
          %s208 = sshll.u32 %s201, 4
          %s209 = int_to_ptr.vmem [resolvable:$true] %s208
          %214 = dma.hbm_to_vmem [thread:$0]  %s207, 12800, %s209, %s198, 512, 256, 16
        $region32: #{decoder_forward.1} parent=27 // pred_fallthru
          _
        // Predicated region
        $region33: #{decoder_forward.1} parent=27 // pred_check
          %p215 = pneg %p124
        $region34: #{decoder_forward.1} parent=27 // pred_check_branch
          %217 = sbr.rel (%p215) target = $region36
        $region35: #{decoder_forward.1} parent=27 // pred_region
          %s218 = smul.u32 4, %s15
          %p219 = scmp.lt.s32.totalorder %s218, 7
          %s220 = scalar_select %p219, %s218, 7
          %s221 = scalar_lea.vmem %s4, %s220
          %s222 = smul.u32 4, %s15
        $region36: #{decoder_forward.1} parent=27 // pred_fallthru
          _
      $region28: #{decoder_forward.1} parent=5 // pred_fallthru
        _
      %p223 = scmp.le.s32.totalorder 1, %s15
      %p224 = scmp.lt.s32.totalorder %s15, 3
      %p225 = pnand %p223, %p224
      %p226 = pneg %p225
      // Predicated region
      $region37: #{decoder_forward.1} parent=5 // pred_check
        _
      $region38: #{decoder_forward.1} parent=5 // pred_check_branch
        %228 = sbr.rel (%p225) target = $region40
      $region39: #{decoder_forward.1} parent=5 // pred_region
        %s229 = ssub.s32 %s15, 1
        // Predicated region
        $region41: #{decoder_forward.1} parent=39 // pred_check
          %p230 = pneg %p57
        $region42: #{decoder_forward.1} parent=39 // pred_check_branch
          %232 = sbr.rel (%p230) target = $region44
        $region43: #{decoder_forward.1} parent=39 // pred_region
          %233 = dma.done [#allocation3], 768
        $region44: #{decoder_forward.1} parent=39 // pred_fallthru
          _
        %s234 = sand.u32 %s91, 1
        %s235 = scalar_lea.sflag [#allocation5], %s234
        %s236 = sand.u32 %s91, 1
        %s237 = smul.addr %s236, 800
        %s238 = scalar_lea.vmem [#allocation4], %s237
        // Predicated region
        $region45: #{decoder_forward.1} parent=39 // pred_check
          %p239 = pneg %p104
        $region46: #{decoder_forward.1} parent=39 // pred_check_branch
          %241 = sbr.rel (%p239) target = $region48
        $region47: #{decoder_forward.1} parent=39 // pred_region
          %242 = dma.done %s235, 12800
        $region48: #{decoder_forward.1} parent=39 // pred_fallthru
          _
        %p243 = pneg %p36
        %p244 = pneg %p33
        %p245 = pneg %p57
        %p246 = pneg %p54
        %p247 = pneg %p78
        %p248 = pneg %p75
        %s249 = sand.u32 %s91, 1
        %s250 = scalar_lea.sflag [#allocation5], %s249
        %s251 = sand.u32 %s91, 1
        %s252 = smul.addr %s251, 800
        %s253 = scalar_lea.vmem [#allocation4], %s252
        %p254 = pneg %p104
        %p255 = pneg %p101
        %s256 = smul.u32 4, %s20
        %p257 = scmp.lt.s32.totalorder %s256, 7
        %s258 = scalar_select %p257, %s256, 7
        %s259 = scalar_lea.vmem %s4, %s258
        %p260 = pneg %p130
        %p261 = pneg %p127
        %p262 = pneg %p156
        %p263 = pneg %p153
        %s264 = smul.u32 4, %s20
        %p265 = scmp.lt.s32.totalorder %s264, 7
        %s266 = scalar_select %p265, %s264, 7
        %s267 = smul.addr %s266, 8
        %s268 = scalar_lea.vmem %s5, %s267
        %s269 = smul.u32 4, %s20
        %s270 = smul.u32 4, %s20
        %p271 = scmp.lt.s32.totalorder %s270, 7
        %s272 = scalar_select %p271, %s270, 7
        %s273 = scalar_lea.vmem %s4, %s272
        %s274 = smul.u32 4, %s20
        %s275 = smul.u32 4, %s20
        %p276 = scmp.lt.s32.totalorder %s275, 7
        %s277 = scalar_select %p276, %s275, 7
        %s278 = smul.addr %s277, 8
        %s279 = scalar_lea.vmem %s5, %s278
        %s280 = smul.u32 4, %s20
        %v282 = vld [vmem:[%s0] sm:$0xf]
        %v283 = vld [vmem:[#allocation2] sm:$0xff]
        %v284 = vld [vmem:[#allocation2 + $0x8] sm:$0xff]
        %v285 = vld [vmem:[#allocation2 + $0x10] sm:$0xff]
        %v286 = vld [vmem:[#allocation2 + $0x18] sm:$0xff]
        %v287 = vld [vmem:[#allocation2 + $0x20] sm:$0x33]
        %v288 = vld [vmem:[#allocation2 + $0x28] sm:$0x33]
        %v289 = vld [vmem:[%s2] sm:$0xf]
        %v291 = vlaneseq
        %v292 = vshrl.u32 %v291, 7
        %v293 = vsub.s32 0, %v292
        %v294 = vrot.slane %v289, %v293
        %v295 = vlaneseq
        %v296 = vshrl.u32 %v295, 7
        %v297 = vsub.s32 1, %v296
        %v298 = vrot.slane %v289, %v297
        %v299 = vlaneseq
        %v300 = vshrl.u32 %v299, 7
        %v301 = vsub.s32 2, %v300
        %v302 = vrot.slane %v289, %v301
        %v303 = vlaneseq
        %v304 = vshrl.u32 %v303, 7
        %v305 = vsub.s32 3, %v304
        %v306 = vrot.slane %v289, %v305
        %v317 = vunpack.c.l.b16 %v283
        %v318 = vunpack.c.h.b16 %v283
        %v319 = vunpack.c.l.b16 %v284
        %v320 = vunpack.c.h.b16 %v284
        %v321 = vunpack.c.l.b16 %v285
        %v322 = vunpack.c.h.b16 %v285
        %v323 = vunpack.c.l.b16 %v286
        %v324 = vunpack.c.h.b16 %v286
        %v325 = vunpack.c.l.b16 %v287
        %v326 = vunpack.c.h.b16 %v287
        %v327 = vunpack.c.l.b16 %v288
        %v328 = vunpack.c.h.b16 %v288
        %v329 = vpack.c.b16 %v321, %v317
        %v330 = vpack.c.b16 %v322, %v318
        %v331 = vpack.c.b16 %v323, %v319
        %v332 = vpack.c.b16 %v324, %v320
        %v333 = vpack.c.b16 %v325, %v325
        %v334 = vpack.c.b16 %v326, %v326
        %v335 = vpack.c.b16 %v327, %v327
        %v336 = vpack.c.b16 %v328, %v328
        %vm341 = vcmask 162816
        %v343 = vsel %vm341, %v282, 0
        %vm345 = vcmask 1041408
        %v347 = vsel %vm345, %v333, 0
        %v350 = vsel %vm345, %v334, 0
        %v353 = vsel %vm345, %v335, 0
        %v356 = vsel %vm345, %v336, 0
        %358 = vmatprep.subr.bf16.mxu0 %v330
        %359 = vmatpush1.bf16.msra.mxu0 %v329
        %360 = vmatprep.subr.bf16.mxu0 %v350
        %361 = vmatpush1.bf16.msra.mxu0 %v347
        %362 = vmatprep.subr.bf16.mxu0 0
        %363 = vmatpush1.bf16.msra.mxu0 0
        %364 = vmatprep.subr.bf16.mxu0 0
        %365 = vmatpush1.bf16.msra.mxu0 0
        %366 = vmatprep.subr.bf16.mxu0 0
        %367 = vmatpush1.bf16.msra.mxu0 0
        %368 = vmatprep.subr.bf16.mxu0 0
        %369 = vmatpush1.bf16.msra.mxu0 0
        %370 = vmatprep.subr.bf16.mxu0 0
        %371 = vmatpush1.bf16.msra.mxu0 0
        %372 = vmatprep.subr.bf16.mxu0 0
        %373 = vmatpush1.bf16.msra.mxu0 0
        %374 = vmatprep.subr.bf16.mxu0 0
        %375 = vmatpush1.bf16.msra.mxu0 0
        %376 = vmatprep.subr.bf16.mxu0 0
        %377 = vmatpush1.bf16.msra.mxu0 0
        %378 = vmatprep.subr.bf16.mxu0 0
        %379 = vmatpush1.bf16.msra.mxu0 0
        %380 = vmatprep.subr.bf16.mxu0 0
        %381 = vmatpush1.bf16.msra.mxu0 0
        %382 = vmatprep.subr.bf16.mxu0 0
        %383 = vmatpush1.bf16.msra.mxu0 0
        %384 = vmatprep.subr.bf16.mxu0 0
        %385 = vmatpush1.bf16.msra.mxu0 0
        %386 = vmatprep.subr.bf16.mxu0 0
        %387 = vmatpush1.bf16.msra.mxu0 0
        %388 = vmatprep.subr.bf16.mxu0 0
        %389 = vmatpush1.bf16.msra.mxu0 0
        %390 = vmatprep.mubr.bf16.mxu0 0
        %391 = vmatmul.mubr.bf16.gmra.mrb[0].mxu0 %v343
        %v392 = vpop.f32.mrb[0].mxu0
        %v393 = vadd.f32 %v294, %v392
        %v394 = vpop.f32.mrb[0].mxu0
        %v395 = vadd.f32 %v298, %v394
        %v396 = vpop.f32.mrb[0].mxu0
        %v397 = vpop.f32.mrb[0].mxu0
        %398 = vdwg.mxu0
        %399 = vmatprep.subr.bf16.mxu0 %v332
        %400 = vmatpush1.bf16.msra.mxu0 %v331
        %401 = vmatprep.subr.bf16.mxu0 %v356
        %402 = vmatpush1.bf16.msra.mxu0 %v353
        %403 = vmatprep.subr.bf16.mxu0 0
        %404 = vmatpush1.bf16.msra.mxu0 0
        %405 = vmatprep.subr.bf16.mxu0 0
        %406 = vmatpush1.bf16.msra.mxu0 0
        %407 = vmatprep.subr.bf16.mxu0 0
        %408 = vmatpush1.bf16.msra.mxu0 0
        %409 = vmatprep.subr.bf16.mxu0 0
        %410 = vmatpush1.bf16.msra.mxu0 0
        %411 = vmatprep.subr.bf16.mxu0 0
        %412 = vmatpush1.bf16.msra.mxu0 0
        %413 = vmatprep.subr.bf16.mxu0 0
        %414 = vmatpush1.bf16.msra.mxu0 0
        %415 = vmatprep.subr.bf16.mxu0 0
        %416 = vmatpush1.bf16.msra.mxu0 0
        %417 = vmatprep.subr.bf16.mxu0 0
        %418 = vmatpush1.bf16.msra.mxu0 0
        %419 = vmatprep.subr.bf16.mxu0 0
        %420 = vmatpush1.bf16.msra.mxu0 0
        %421 = vmatprep.subr.bf16.mxu0 0
        %422 = vmatpush1.bf16.msra.mxu0 0
        %423 = vmatprep.subr.bf16.mxu0 0
        %424 = vmatpush1.bf16.msra.mxu0 0
        %425 = vmatprep.subr.bf16.mxu0 0
        %426 = vmatpush1.bf16.msra.mxu0 0
        %427 = vmatprep.subr.bf16.mxu0 0
        %428 = vmatpush1.bf16.msra.mxu0 0
        %429 = vmatprep.subr.bf16.mxu0 0
        %430 = vmatpush1.bf16.msra.mxu0 0
        %431 = vmatprep.mubr.bf16.mxu0 0
        %432 = vmatmul.mubr.bf16.gmra.mrb[0].mxu0 %v343
        %v433 = vpop.f32.mrb[0].mxu0
        %v434 = vadd.f32 %v302, %v433
        %v435 = vpop.f32.mrb[0].mxu0
        %v436 = vadd.f32 %v306, %v435
        %v437 = vpop.f32.mrb[0].mxu0
        %v438 = vpop.f32.mrb[0].mxu0
        %439 = vdwg.mxu0
        %v440 = vmax.f32 %v393, 0.0
        %v441 = vmax.f32 %v395, 0.0
        %v442 = vmax.f32 %v434, 0.0
        %v443 = vmax.f32 %v436, 0.0
        %v444 = vpack.c.bf16 %v440, %v440
        %v445 = vpack.c.bf16 %v441, %v441
        %v446 = vpack.c.bf16 %v442, %v442
        %v447 = vpack.c.bf16 %v443, %v443
        %v448 = vld [vmem:[%s238] sm:$0xff]
        %v449 = vld [vmem:[%s238 + $0x8] sm:$0xff]
        %v450 = vld [vmem:[%s238 + $0x10] sm:$0xff]
        %v451 = vld [vmem:[%s238 + $0x18] sm:$0xff]
        %v452 = vld [vmem:[%s238 + $0x20] sm:$0xff]
        %v453 = vld [vmem:[%s238 + $0x28] sm:$0xff]
        %v454 = vld [vmem:[%s238 + $0x30] sm:$0xff]
        %v455 = vld [vmem:[%s238 + $0x38] sm:$0xff]
        %v456 = vld [vmem:[%s238 + $0x40] sm:$0xff]
        %v457 = vld [vmem:[%s238 + $0x48] sm:$0xff]
        %v458 = vld [vmem:[%s238 + $0x50] sm:$0xff]
        %v459 = vld [vmem:[%s238 + $0x58] sm:$0xff]
        %v460 = vld [vmem:[%s238 + $0x60] sm:$0xff]
        %v461 = vld [vmem:[%s238 + $0x68] sm:$0xff]
        %v462 = vld [vmem:[%s238 + $0x70] sm:$0xff]
        %v463 = vld [vmem:[%s238 + $0x78] sm:$0xff]
        %v464 = vld [vmem:[%s238 + $0x80] sm:$0xff]
        %v465 = vld [vmem:[%s238 + $0x88] sm:$0xff]
        %v466 = vld [vmem:[%s238 + $0x90] sm:$0xff]
        %v467 = vld [vmem:[%s238 + $0x98] sm:$0xff]
        %v468 = vld [vmem:[%s238 + $0xa0] sm:$0xff]
        %v469 = vld [vmem:[%s238 + $0xa8] sm:$0xff]
        %v470 = vld [vmem:[%s238 + $0xb0] sm:$0xff]
        %v471 = vld [vmem:[%s238 + $0xb8] sm:$0xff]
        %v472 = vld [vmem:[%s238 + $0xc0] sm:$0xff]
        %v473 = vld [vmem:[%s238 + $0xc8] sm:$0xff]
        %v474 = vld [vmem:[%s238 + $0xd0] sm:$0xff]
        %v475 = vld [vmem:[%s238 + $0xd8] sm:$0xff]
        %v476 = vld [vmem:[%s238 + $0xe0] sm:$0xff]
        %v477 = vld [vmem:[%s238 + $0xe8] sm:$0xff]
        %v478 = vld [vmem:[%s238 + $0xf0] sm:$0xff]
        %v479 = vld [vmem:[%s238 + $0xf8] sm:$0xff]
        %v480 = vld [vmem:[%s238 + $0x100] sm:$0xff]
        %v481 = vld [vmem:[%s238 + $0x108] sm:$0xff]
        %v482 = vld [vmem:[%s238 + $0x110] sm:$0xff]
        %v483 = vld [vmem:[%s238 + $0x118] sm:$0xff]
        %v484 = vld [vmem:[%s238 + $0x120] sm:$0xff]
        %v485 = vld [vmem:[%s238 + $0x128] sm:$0xff]
        %v486 = vld [vmem:[%s238 + $0x130] sm:$0xff]
        %v487 = vld [vmem:[%s238 + $0x138] sm:$0xff]
        %v488 = vld [vmem:[%s238 + $0x140] sm:$0xff]
        %v489 = vld [vmem:[%s238 + $0x148] sm:$0xff]
        %v490 = vld [vmem:[%s238 + $0x150] sm:$0xff]
        %v491 = vld [vmem:[%s238 + $0x158] sm:$0xff]
        %v492 = vld [vmem:[%s238 + $0x160] sm:$0xff]
        %v493 = vld [vmem:[%s238 + $0x168] sm:$0xff]
        %v494 = vld [vmem:[%s238 + $0x170] sm:$0xff]
        %v495 = vld [vmem:[%s238 + $0x178] sm:$0xff]
        %v496 = vld [vmem:[%s238 + $0x180] sm:$0xff]
        %v497 = vld [vmem:[%s238 + $0x188] sm:$0xff]
        %v498 = vld [vmem:[%s238 + $0x190] sm:$0xff]
        %v499 = vld [vmem:[%s238 + $0x198] sm:$0xff]
        %v500 = vld [vmem:[%s238 + $0x1a0] sm:$0xff]
        %v501 = vld [vmem:[%s238 + $0x1a8] sm:$0xff]
        %v502 = vld [vmem:[%s238 + $0x1b0] sm:$0xff]
        %v503 = vld [vmem:[%s238 + $0x1b8] sm:$0xff]
        %v504 = vld [vmem:[%s238 + $0x1c0] sm:$0xff]
        %v505 = vld [vmem:[%s238 + $0x1c8] sm:$0xff]
        %v506 = vld [vmem:[%s238 + $0x1d0] sm:$0xff]
        %v507 = vld [vmem:[%s238 + $0x1d8] sm:$0xff]
        %v508 = vld [vmem:[%s238 + $0x1e0] sm:$0xff]
        %v509 = vld [vmem:[%s238 + $0x1e8] sm:$0xff]
        %v510 = vld [vmem:[%s238 + $0x1f0] sm:$0xff]
        %v511 = vld [vmem:[%s238 + $0x1f8] sm:$0xff]
        %v512 = vld [vmem:[%s238 + $0x200] sm:$0xff]
        %v513 = vld [vmem:[%s238 + $0x208] sm:$0xff]
        %v514 = vld [vmem:[%s238 + $0x210] sm:$0xff]
        %v515 = vld [vmem:[%s238 + $0x218] sm:$0xff]
        %v516 = vld [vmem:[%s238 + $0x220] sm:$0xff]
        %v517 = vld [vmem:[%s238 + $0x228] sm:$0xff]
        %v518 = vld [vmem:[%s238 + $0x230] sm:$0xff]
        %v519 = vld [vmem:[%s238 + $0x238] sm:$0xff]
        %v520 = vld [vmem:[%s238 + $0x240] sm:$0xff]
        %v521 = vld [vmem:[%s238 + $0x248] sm:$0xff]
        %v522 = vld [vmem:[%s238 + $0x250] sm:$0xff]
        %v523 = vld [vmem:[%s238 + $0x258] sm:$0xff]
        %v524 = vld [vmem:[%s238 + $0x260] sm:$0xff]
        %v525 = vld [vmem:[%s238 + $0x268] sm:$0xff]
        %v526 = vld [vmem:[%s238 + $0x270] sm:$0xff]
        %v527 = vld [vmem:[%s238 + $0x278] sm:$0xff]
        %v528 = vld [vmem:[%s238 + $0x280] sm:$0xff]
        %v529 = vld [vmem:[%s238 + $0x288] sm:$0xff]
        %v530 = vld [vmem:[%s238 + $0x290] sm:$0xff]
        %v531 = vld [vmem:[%s238 + $0x298] sm:$0xff]
        %v532 = vld [vmem:[%s238 + $0x2a0] sm:$0xff]
        %v533 = vld [vmem:[%s238 + $0x2a8] sm:$0xff]
        %v534 = vld [vmem:[%s238 + $0x2b0] sm:$0xff]
        %v535 = vld [vmem:[%s238 + $0x2b8] sm:$0xff]
        %v536 = vld [vmem:[%s238 + $0x2c0] sm:$0xff]
        %v537 = vld [vmem:[%s238 + $0x2c8] sm:$0xff]
        %v538 = vld [vmem:[%s238 + $0x2d0] sm:$0xff]
        %v539 = vld [vmem:[%s238 + $0x2d8] sm:$0xff]
        %v540 = vld [vmem:[%s238 + $0x2e0] sm:$0xff]
        %v541 = vld [vmem:[%s238 + $0x2e8] sm:$0xff]
        %v542 = vld [vmem:[%s238 + $0x2f0] sm:$0xff]
        %v543 = vld [vmem:[%s238 + $0x2f8] sm:$0xff]
        %v544 = vld [vmem:[%s238 + $0x300] sm:$0xff]
        %v545 = vld [vmem:[%s238 + $0x308] sm:$0xff]
        %v546 = vld [vmem:[%s238 + $0x310] sm:$0xff]
        %v547 = vld [vmem:[%s238 + $0x318] sm:$0xff]
        %v548 = vld [vmem:[%s273] sm:$0xf]
        %v550 = vlaneseq
        %v551 = vshrl.u32 %v550, 7
        %v552 = vsub.s32 0, %v551
        %v553 = vrot.slane %v548, %v552
        %v554 = vlaneseq
        %v555 = vshrl.u32 %v554, 7
        %v556 = vsub.s32 1, %v555
        %v557 = vrot.slane %v548, %v556
        %v558 = vlaneseq
        %v559 = vshrl.u32 %v558, 7
        %v560 = vsub.s32 2, %v559
        %v561 = vrot.slane %v548, %v560
        %v562 = vlaneseq
        %v563 = vshrl.u32 %v562, 7
        %v564 = vsub.s32 3, %v563
        %v565 = vrot.slane %v548, %v564
        %v670 = vunpack.c.l.b16 %v448
        %v671 = vunpack.c.h.b16 %v448
        %v672 = vunpack.c.l.b16 %v449
        %v673 = vunpack.c.h.b16 %v449
        %v674 = vunpack.c.l.b16 %v450
        %v675 = vunpack.c.h.b16 %v450
        %v676 = vunpack.c.l.b16 %v451
        %v677 = vunpack.c.h.b16 %v451
        %v678 = vunpack.c.l.b16 %v452
        %v679 = vunpack.c.h.b16 %v452
        %v680 = vunpack.c.l.b16 %v453
        %v681 = vunpack.c.h.b16 %v453
        %v682 = vunpack.c.l.b16 %v454
        %v683 = vunpack.c.h.b16 %v454
        %v684 = vunpack.c.l.b16 %v455
        %v685 = vunpack.c.h.b16 %v455
        %v686 = vunpack.c.l.b16 %v456
        %v687 = vunpack.c.h.b16 %v456
        %v688 = vunpack.c.l.b16 %v457
        %v689 = vunpack.c.h.b16 %v457
        %v690 = vunpack.c.l.b16 %v458
        %v691 = vunpack.c.h.b16 %v458
        %v692 = vunpack.c.l.b16 %v459
        %v693 = vunpack.c.h.b16 %v459
        %v694 = vunpack.c.l.b16 %v460
        %v695 = vunpack.c.h.b16 %v460
        %v696 = vunpack.c.l.b16 %v461
        %v697 = vunpack.c.h.b16 %v461
        %v698 = vunpack.c.l.b16 %v462
        %v699 = vunpack.c.h.b16 %v462
        %v700 = vunpack.c.l.b16 %v463
        %v701 = vunpack.c.h.b16 %v463
        %v702 = vunpack.c.l.b16 %v464
        %v703 = vunpack.c.h.b16 %v464
        %v704 = vunpack.c.l.b16 %v465
        %v705 = vunpack.c.h.b16 %v465
        %v706 = vunpack.c.l.b16 %v466
        %v707 = vunpack.c.h.b16 %v466
        %v708 = vunpack.c.l.b16 %v467
        %v709 = vunpack.c.h.b16 %v467
        %v710 = vunpack.c.l.b16 %v468
        %v711 = vunpack.c.h.b16 %v468
        %v712 = vunpack.c.l.b16 %v469
        %v713 = vunpack.c.h.b16 %v469
        %v714 = vunpack.c.l.b16 %v470
        %v715 = vunpack.c.h.b16 %v470
        %v716 = vunpack.c.l.b16 %v471
        %v717 = vunpack.c.h.b16 %v471
        %v718 = vunpack.c.l.b16 %v472
        %v719 = vunpack.c.h.b16 %v472
        %v720 = vunpack.c.l.b16 %v473
        %v721 = vunpack.c.h.b16 %v473
        %v722 = vunpack.c.l.b16 %v474
        %v723 = vunpack.c.h.b16 %v474
        %v724 = vunpack.c.l.b16 %v475
        %v725 = vunpack.c.h.b16 %v475
        %v726 = vunpack.c.l.b16 %v476
        %v727 = vunpack.c.h.b16 %v476
        %v728 = vunpack.c.l.b16 %v477
        %v729 = vunpack.c.h.b16 %v477
        %v730 = vunpack.c.l.b16 %v478
        %v731 = vunpack.c.h.b16 %v478
        %v732 = vunpack.c.l.b16 %v479
        %v733 = vunpack.c.h.b16 %v479
        %v734 = vunpack.c.l.b16 %v480
        %v735 = vunpack.c.h.b16 %v480
        %v736 = vunpack.c.l.b16 %v481
        %v737 = vunpack.c.h.b16 %v481
        %v738 = vunpack.c.l.b16 %v482
        %v739 = vunpack.c.h.b16 %v482
        %v740 = vunpack.c.l.b16 %v483
        %v741 = vunpack.c.h.b16 %v483
        %v742 = vunpack.c.l.b16 %v484
        %v743 = vunpack.c.h.b16 %v484
        %v744 = vunpack.c.l.b16 %v485
        %v745 = vunpack.c.h.b16 %v485
        %v746 = vunpack.c.l.b16 %v486
        %v747 = vunpack.c.h.b16 %v486
        %v748 = vunpack.c.l.b16 %v487
        %v749 = vunpack.c.h.b16 %v487
        %v750 = vunpack.c.l.b16 %v488
        %v751 = vunpack.c.h.b16 %v488
        %v752 = vunpack.c.l.b16 %v489
        %v753 = vunpack.c.h.b16 %v489
        %v754 = vunpack.c.l.b16 %v490
        %v755 = vunpack.c.h.b16 %v490
        %v756 = vunpack.c.l.b16 %v491
        %v757 = vunpack.c.h.b16 %v491
        %v758 = vunpack.c.l.b16 %v492
        %v759 = vunpack.c.h.b16 %v492
        %v760 = vunpack.c.l.b16 %v493
        %v761 = vunpack.c.h.b16 %v493
        %v762 = vunpack.c.l.b16 %v494
        %v763 = vunpack.c.h.b16 %v494
        %v764 = vunpack.c.l.b16 %v495
        %v765 = vunpack.c.h.b16 %v495
        %v766 = vunpack.c.l.b16 %v496
        %v767 = vunpack.c.h.b16 %v496
        %v768 = vunpack.c.l.b16 %v497
        %v769 = vunpack.c.h.b16 %v497
        %v770 = vunpack.c.l.b16 %v498
        %v771 = vunpack.c.h.b16 %v498
        %v772 = vunpack.c.l.b16 %v499
        %v773 = vunpack.c.h.b16 %v499
        %v774 = vunpack.c.l.b16 %v500
        %v775 = vunpack.c.h.b16 %v500
        %v776 = vunpack.c.l.b16 %v501
        %v777 = vunpack.c.h.b16 %v501
        %v778 = vunpack.c.l.b16 %v502
        %v779 = vunpack.c.h.b16 %v502
        %v780 = vunpack.c.l.b16 %v503
        %v781 = vunpack.c.h.b16 %v503
        %v782 = vunpack.c.l.b16 %v504
        %v783 = vunpack.c.h.b16 %v504
        %v784 = vunpack.c.l.b16 %v505
        %v785 = vunpack.c.h.b16 %v505
        %v786 = vunpack.c.l.b16 %v506
        %v787 = vunpack.c.h.b16 %v506
        %v788 = vunpack.c.l.b16 %v507
        %v789 = vunpack.c.h.b16 %v507
        %v790 = vunpack.c.l.b16 %v508
        %v791 = vunpack.c.h.b16 %v508
        %v792 = vunpack.c.l.b16 %v509
        %v793 = vunpack.c.h.b16 %v509
        %v794 = vunpack.c.l.b16 %v510
        %v795 = vunpack.c.h.b16 %v510
        %v796 = vunpack.c.l.b16 %v511
        %v797 = vunpack.c.h.b16 %v511
        %v798 = vunpack.c.l.b16 %v512
        %v799 = vunpack.c.h.b16 %v512
        %v800 = vunpack.c.l.b16 %v513
        %v801 = vunpack.c.h.b16 %v513
        %v802 = vunpack.c.l.b16 %v514
        %v803 = vunpack.c.h.b16 %v514
        %v804 = vunpack.c.l.b16 %v515
        %v805 = vunpack.c.h.b16 %v515
        %v806 = vunpack.c.l.b16 %v516
        %v807 = vunpack.c.h.b16 %v516
        %v808 = vunpack.c.l.b16 %v517
        %v809 = vunpack.c.h.b16 %v517
        %v810 = vunpack.c.l.b16 %v518
        %v811 = vunpack.c.h.b16 %v518
        %v812 = vunpack.c.l.b16 %v519
        %v813 = vunpack.c.h.b16 %v519
        %v814 = vunpack.c.l.b16 %v520
        %v815 = vunpack.c.h.b16 %v520
        %v816 = vunpack.c.l.b16 %v521
        %v817 = vunpack.c.h.b16 %v521
        %v818 = vunpack.c.l.b16 %v522
        %v819 = vunpack.c.h.b16 %v522
        %v820 = vunpack.c.l.b16 %v523
        %v821 = vunpack.c.h.b16 %v523
        %v822 = vunpack.c.l.b16 %v524
        %v823 = vunpack.c.h.b16 %v524
        %v824 = vunpack.c.l.b16 %v525
        %v825 = vunpack.c.h.b16 %v525
        %v826 = vunpack.c.l.b16 %v526
        %v827 = vunpack.c.h.b16 %v526
        %v828 = vunpack.c.l.b16 %v527
        %v829 = vunpack.c.h.b16 %v527
        %v830 = vunpack.c.l.b16 %v528
        %v831 = vunpack.c.h.b16 %v528
        %v832 = vunpack.c.l.b16 %v529
        %v833 = vunpack.c.h.b16 %v529
        %v834 = vunpack.c.l.b16 %v530
        %v835 = vunpack.c.h.b16 %v530
        %v836 = vunpack.c.l.b16 %v531
        %v837 = vunpack.c.h.b16 %v531
        %v838 = vunpack.c.l.b16 %v532
        %v839 = vunpack.c.h.b16 %v532
        %v840 = vunpack.c.l.b16 %v533
        %v841 = vunpack.c.h.b16 %v533
        %v842 = vunpack.c.l.b16 %v534
        %v843 = vunpack.c.h.b16 %v534
        %v844 = vunpack.c.l.b16 %v535
        %v845 = vunpack.c.h.b16 %v535
        %v846 = vunpack.c.l.b16 %v536
        %v847 = vunpack.c.h.b16 %v536
        %v848 = vunpack.c.l.b16 %v537
        %v849 = vunpack.c.h.b16 %v537
        %v850 = vunpack.c.l.b16 %v538
        %v851 = vunpack.c.h.b16 %v538
        %v852 = vunpack.c.l.b16 %v539
        %v853 = vunpack.c.h.b16 %v539
        %v854 = vunpack.c.l.b16 %v540
        %v855 = vunpack.c.h.b16 %v540
        %v856 = vunpack.c.l.b16 %v541
        %v857 = vunpack.c.h.b16 %v541
        %v858 = vunpack.c.l.b16 %v542
        %v859 = vunpack.c.h.b16 %v542
        %v860 = vunpack.c.l.b16 %v543
        %v861 = vunpack.c.h.b16 %v543
        %v862 = vunpack.c.l.b16 %v544
        %v863 = vunpack.c.h.b16 %v544
        %v864 = vunpack.c.l.b16 %v545
        %v865 = vunpack.c.h.b16 %v545
        %v866 = vunpack.c.l.b16 %v546
        %v867 = vunpack.c.h.b16 %v546
        %v868 = vunpack.c.l.b16 %v547
        %v869 = vunpack.c.h.b16 %v547
        %v870 = vpack.c.b16 %v674, %v670
        %v871 = vpack.c.b16 %v675, %v671
        %v872 = vpack.c.b16 %v676, %v672
        %v873 = vpack.c.b16 %v677, %v673
        %v874 = vpack.c.b16 %v682, %v678
        %v875 = vpack.c.b16 %v683, %v679
        %v876 = vpack.c.b16 %v684, %v680
        %v877 = vpack.c.b16 %v685, %v681
        %v878 = vpack.c.b16 %v690, %v686
        %v879 = vpack.c.b16 %v691, %v687
        %v880 = vpack.c.b16 %v692, %v688
        %v881 = vpack.c.b16 %v693, %v689
        %v882 = vpack.c.b16 %v698, %v694
        %v883 = vpack.c.b16 %v699, %v695
        %v884 = vpack.c.b16 %v700, %v696
        %v885 = vpack.c.b16 %v701, %v697
        %v886 = vpack.c.b16 %v706, %v702
        %v887 = vpack.c.b16 %v707, %v703
        %v888 = vpack.c.b16 %v708, %v704
        %v889 = vpack.c.b16 %v709, %v705
        %v890 = vpack.c.b16 %v714, %v710
        %v891 = vpack.c.b16 %v715, %v711
        %v892 = vpack.c.b16 %v716, %v712
        %v893 = vpack.c.b16 %v717, %v713
        %v894 = vpack.c.b16 %v722, %v718
        %v895 = vpack.c.b16 %v723, %v719
        %v896 = vpack.c.b16 %v724, %v720
        %v897 = vpack.c.b16 %v725, %v721
        %v898 = vpack.c.b16 %v730, %v726
        %v899 = vpack.c.b16 %v731, %v727
        %v900 = vpack.c.b16 %v732, %v728
        %v901 = vpack.c.b16 %v733, %v729
        %v902 = vpack.c.b16 %v738, %v734
        %v903 = vpack.c.b16 %v739, %v735
        %v904 = vpack.c.b16 %v740, %v736
        %v905 = vpack.c.b16 %v741, %v737
        %v906 = vpack.c.b16 %v746, %v742
        %v907 = vpack.c.b16 %v747, %v743
        %v908 = vpack.c.b16 %v748, %v744
        %v909 = vpack.c.b16 %v749, %v745
        %v910 = vpack.c.b16 %v754, %v750
        %v911 = vpack.c.b16 %v755, %v751
        %v912 = vpack.c.b16 %v756, %v752
        %v913 = vpack.c.b16 %v757, %v753
        %v914 = vpack.c.b16 %v762, %v758
        %v915 = vpack.c.b16 %v763, %v759
        %v916 = vpack.c.b16 %v764, %v760
        %v917 = vpack.c.b16 %v765, %v761
        %v918 = vpack.c.b16 %v770, %v766
        %v919 = vpack.c.b16 %v771, %v767
        %v920 = vpack.c.b16 %v772, %v768
        %v921 = vpack.c.b16 %v773, %v769
        %v922 = vpack.c.b16 %v778, %v774
        %v923 = vpack.c.b16 %v779, %v775
        %v924 = vpack.c.b16 %v780, %v776
        %v925 = vpack.c.b16 %v781, %v777
        %v926 = vpack.c.b16 %v786, %v782
        %v927 = vpack.c.b16 %v787, %v783
        %v928 = vpack.c.b16 %v788, %v784
        %v929 = vpack.c.b16 %v789, %v785
        %v930 = vpack.c.b16 %v794, %v790
        %v931 = vpack.c.b16 %v795, %v791
        %v932 = vpack.c.b16 %v796, %v792
        %v933 = vpack.c.b16 %v797, %v793
        %v934 = vpack.c.b16 %v802, %v798
        %v935 = vpack.c.b16 %v803, %v799
        %v936 = vpack.c.b16 %v804, %v800
        %v937 = vpack.c.b16 %v805, %v801
        %v938 = vpack.c.b16 %v810, %v806
        %v939 = vpack.c.b16 %v811, %v807
        %v940 = vpack.c.b16 %v812, %v808
        %v941 = vpack.c.b16 %v813, %v809
        %v942 = vpack.c.b16 %v818, %v814
        %v943 = vpack.c.b16 %v819, %v815
        %v944 = vpack.c.b16 %v820, %v816
        %v945 = vpack.c.b16 %v821, %v817
        %v946 = vpack.c.b16 %v826, %v822
        %v947 = vpack.c.b16 %v827, %v823
        %v948 = vpack.c.b16 %v828, %v824
        %v949 = vpack.c.b16 %v829, %v825
        %v950 = vpack.c.b16 %v834, %v830
        %v951 = vpack.c.b16 %v835, %v831
        %v952 = vpack.c.b16 %v836, %v832
        %v953 = vpack.c.b16 %v837, %v833
        %v954 = vpack.c.b16 %v842, %v838
        %v955 = vpack.c.b16 %v843, %v839
        %v956 = vpack.c.b16 %v844, %v840
        %v957 = vpack.c.b16 %v845, %v841
        %v958 = vpack.c.b16 %v850, %v846
        %v959 = vpack.c.b16 %v851, %v847
        %v960 = vpack.c.b16 %v852, %v848
        %v961 = vpack.c.b16 %v853, %v849
        %v962 = vpack.c.b16 %v858, %v854
        %v963 = vpack.c.b16 %v859, %v855
        %v964 = vpack.c.b16 %v860, %v856
        %v965 = vpack.c.b16 %v861, %v857
        %v966 = vpack.c.b16 %v866, %v862
        %v967 = vpack.c.b16 %v867, %v863
        %v968 = vpack.c.b16 %v868, %v864
        %v969 = vpack.c.b16 %v869, %v865
        %vm1070 = vcmask 130048
        %v1072 = vsel %vm1070, %v447, 0
        %1074 = vmatprep.subr.bf16.mxu0 %v871
        %1075 = vmatpush1.bf16.msra.mxu0 %v870
        %1076 = vmatprep.subr.bf16.mxu0 %v875
        %1077 = vmatpush1.bf16.msra.mxu0 %v874
        %1078 = vmatprep.subr.bf16.mxu0 %v879
        %1079 = vmatpush1.bf16.msra.mxu0 %v878
        %1080 = vmatprep.subr.bf16.mxu0 %v883
        %1081 = vmatpush1.bf16.msra.mxu0 %v882
        %1082 = vmatprep.subr.bf16.mxu0 %v887
        %1083 = vmatpush1.bf16.msra.mxu0 %v886
        %1084 = vmatprep.subr.bf16.mxu0 %v891
        %1085 = vmatpush1.bf16.msra.mxu0 %v890
        %1086 = vmatprep.subr.bf16.mxu0 %v895
        %1087 = vmatpush1.bf16.msra.mxu0 %v894
        %1088 = vmatprep.subr.bf16.mxu0 %v899
        %1089 = vmatpush1.bf16.msra.mxu0 %v898
        %1090 = vmatprep.subr.bf16.mxu0 %v903
        %1091 = vmatpush1.bf16.msra.mxu0 %v902
        %1092 = vmatprep.subr.bf16.mxu0 %v907
        %1093 = vmatpush1.bf16.msra.mxu0 %v906
        %1094 = vmatprep.subr.bf16.mxu0 %v911
        %1095 = vmatpush1.bf16.msra.mxu0 %v910
        %1096 = vmatprep.subr.bf16.mxu0 %v915
        %1097 = vmatpush1.bf16.msra.mxu0 %v914
        %1098 = vmatprep.subr.bf16.mxu0 %v919
        %1099 = vmatpush1.bf16.msra.mxu0 %v918
        %1100 = vmatprep.subr.bf16.mxu0 %v923
        %1101 = vmatpush1.bf16.msra.mxu0 %v922
        %1102 = vmatprep.subr.bf16.mxu0 %v927
        %1103 = vmatpush1.bf16.msra.mxu0 %v926
        %1104 = vmatprep.subr.bf16.mxu0 %v931
        %1105 = vmatpush1.bf16.msra.mxu0 %v930
        %1106 = vmatprep.mubr.bf16.mxu0 %v445
        %1107 = vmatmul.mubr.bf16.gmra.mrb[0].mxu0 %v444
        %v1108 = vpop.f32.mrb[0].mxu0
        %v1109 = vadd.f32 %v553, %v1108
        %v1110 = vpop.f32.mrb[0].mxu0
        %v1111 = vadd.f32 %v557, %v1110
        %v1112 = vpop.f32.mrb[0].mxu0
        %v1113 = vpop.f32.mrb[0].mxu0
        %1114 = vdwg.mxu0
        %1115 = vmatprep.subr.bf16.mxu0 %v935
        %1116 = vmatpush1.bf16.msra.mxu0 %v934
        %1117 = vmatprep.subr.bf16.mxu0 %v939
        %1118 = vmatpush1.bf16.msra.mxu0 %v938
        %1119 = vmatprep.subr.bf16.mxu0 %v943
        %1120 = vmatpush1.bf16.msra.mxu0 %v942
        %1121 = vmatprep.subr.bf16.mxu0 %v947
        %1122 = vmatpush1.bf16.msra.mxu0 %v946
        %1123 = vmatprep.subr.bf16.mxu0 %v951
        %1124 = vmatpush1.bf16.msra.mxu0 %v950
        %1125 = vmatprep.subr.bf16.mxu0 %v955
        %1126 = vmatpush1.bf16.msra.mxu0 %v954
        %1127 = vmatprep.subr.bf16.mxu0 %v959
        %1128 = vmatpush1.bf16.msra.mxu0 %v958
        %1129 = vmatprep.subr.bf16.mxu0 %v963
        %1130 = vmatpush1.bf16.msra.mxu0 %v962
        %1131 = vmatprep.subr.bf16.mxu0 %v967
        %1132 = vmatpush1.bf16.msra.mxu0 %v966
        %1133 = vmatprep.subr.bf16.mxu0 0
        %1134 = vmatpush1.bf16.msra.mxu0 0
        %1135 = vmatprep.subr.bf16.mxu0 0
        %1136 = vmatpush1.bf16.msra.mxu0 0
        %1137 = vmatprep.subr.bf16.mxu0 0
        %1138 = vmatpush1.bf16.msra.mxu0 0
        %1139 = vmatprep.subr.bf16.mxu0 0
        %1140 = vmatpush1.bf16.msra.mxu0 0
        %1141 = vmatprep.subr.bf16.mxu0 0
        %1142 = vmatpush1.bf16.msra.mxu0 0
        %1143 = vmatprep.subr.bf16.mxu0 0
        %1144 = vmatpush1.bf16.msra.mxu0 0
        %1145 = vmatprep.subr.bf16.mxu0 0
        %1146 = vmatpush1.bf16.msra.mxu0 0
        %1147 = vmatprep.mubr.bf16.mxu0 %v1072
        %1148 = vmatmul.mubr.bf16.gmra.mrb[0].mxu0 %v446
        %v1149 = vpop.f32.mrb[0].mxu0
        %v1150 = vadd.f32 %v1109, %v1149
        %v1151 = vpop.f32.mrb[0].mxu0
        %v1152 = vadd.f32 %v1111, %v1151
        %v1153 = vpop.f32.mrb[0].mxu0
        %v1154 = vpop.f32.mrb[0].mxu0
        %1155 = vdwg.mxu0
        %1156 = vmatprep.subr.bf16.mxu0 %v873
        %1157 = vmatpush1.bf16.msra.mxu0 %v872
        %1158 = vmatprep.subr.bf16.mxu0 %v877
        %1159 = vmatpush1.bf16.msra.mxu0 %v876
        %1160 = vmatprep.subr.bf16.mxu0 %v881
        %1161 = vmatpush1.bf16.msra.mxu0 %v880
        %1162 = vmatprep.subr.bf16.mxu0 %v885
        %1163 = vmatpush1.bf16.msra.mxu0 %v884
        %1164 = vmatprep.subr.bf16.mxu0 %v889
        %1165 = vmatpush1.bf16.msra.mxu0 %v888
        %1166 = vmatprep.subr.bf16.mxu0 %v893
        %1167 = vmatpush1.bf16.msra.mxu0 %v892
        %1168 = vmatprep.subr.bf16.mxu0 %v897
        %1169 = vmatpush1.bf16.msra.mxu0 %v896
        %1170 = vmatprep.subr.bf16.mxu0 %v901
        %1171 = vmatpush1.bf16.msra.mxu0 %v900
        %1172 = vmatprep.subr.bf16.mxu0 %v905
        %1173 = vmatpush1.bf16.msra.mxu0 %v904
        %1174 = vmatprep.subr.bf16.mxu0 %v909
        %1175 = vmatpush1.bf16.msra.mxu0 %v908
        %1176 = vmatprep.subr.bf16.mxu0 %v913
        %1177 = vmatpush1.bf16.msra.mxu0 %v912
        %1178 = vmatprep.subr.bf16.mxu0 %v917
        %1179 = vmatpush1.bf16.msra.mxu0 %v916
        %1180 = vmatprep.subr.bf16.mxu0 %v921
        %1181 = vmatpush1.bf16.msra.mxu0 %v920
        %1182 = vmatprep.subr.bf16.mxu0 %v925
        %1183 = vmatpush1.bf16.msra.mxu0 %v924
        %1184 = vmatprep.subr.bf16.mxu0 %v929
        %1185 = vmatpush1.bf16.msra.mxu0 %v928
        %1186 = vmatprep.subr.bf16.mxu0 %v933
        %1187 = vmatpush1.bf16.msra.mxu0 %v932
        %1188 = vmatprep.mubr.bf16.mxu0 %v445
        %1189 = vmatmul.mubr.bf16.gmra.mrb[0].mxu0 %v444
        %v1190 = vpop.f32.mrb[0].mxu0
        %v1191 = vadd.f32 %v561, %v1190
        %v1192 = vpop.f32.mrb[0].mxu0
        %v1193 = vadd.f32 %v565, %v1192
        %v1194 = vpop.f32.mrb[0].mxu0
        %v1195 = vpop.f32.mrb[0].mxu0
        %1196 = vdwg.mxu0
        %1197 = vmatprep.subr.bf16.mxu0 %v937
        %1198 = vmatpush1.bf16.msra.mxu0 %v936
        %1199 = vmatprep.subr.bf16.mxu0 %v941
        %1200 = vmatpush1.bf16.msra.mxu0 %v940
        %1201 = vmatprep.subr.bf16.mxu0 %v945
        %1202 = vmatpush1.bf16.msra.mxu0 %v944
        %1203 = vmatprep.subr.bf16.mxu0 %v949
        %1204 = vmatpush1.bf16.msra.mxu0 %v948
        %1205 = vmatprep.subr.bf16.mxu0 %v953
        %1206 = vmatpush1.bf16.msra.mxu0 %v952
        %1207 = vmatprep.subr.bf16.mxu0 %v957
        %1208 = vmatpush1.bf16.msra.mxu0 %v956
        %1209 = vmatprep.subr.bf16.mxu0 %v961
        %1210 = vmatpush1.bf16.msra.mxu0 %v960
        %1211 = vmatprep.subr.bf16.mxu0 %v965
        %1212 = vmatpush1.bf16.msra.mxu0 %v964
        %1213 = vmatprep.subr.bf16.mxu0 %v969
        %1214 = vmatpush1.bf16.msra.mxu0 %v968
        %1215 = vmatprep.subr.bf16.mxu0 0
        %1216 = vmatpush1.bf16.msra.mxu0 0
        %1217 = vmatprep.subr.bf16.mxu0 0
        %1218 = vmatpush1.bf16.msra.mxu0 0
        %1219 = vmatprep.subr.bf16.mxu0 0
        %1220 = vmatpush1.bf16.msra.mxu0 0
        %1221 = vmatprep.subr.bf16.mxu0 0
        %1222 = vmatpush1.bf16.msra.mxu0 0
        %1223 = vmatprep.subr.bf16.mxu0 0
        %1224 = vmatpush1.bf16.msra.mxu0 0
        %1225 = vmatprep.subr.bf16.mxu0 0
        %1226 = vmatpush1.bf16.msra.mxu0 0
        %1227 = vmatprep.subr.bf16.mxu0 0
        %1228 = vmatpush1.bf16.msra.mxu0 0
        %1229 = vmatprep.mubr.bf16.mxu0 %v1072
        %1230 = vmatmul.mubr.bf16.gmra.mrb[0].mxu0 %v446
        %v1231 = vpop.f32.mrb[0].mxu0
        %v1232 = vadd.f32 %v1191, %v1231
        %v1233 = vpop.f32.mrb[0].mxu0
        %v1234 = vadd.f32 %v1193, %v1233
        %v1235 = vpop.f32.mrb[0].mxu0
        %v1236 = vpop.f32.mrb[0].mxu0
        %1237 = vdwg.mxu0
        %v1238 = vxor.u32 %v1150, 2147483648
        %v1239 = vxor.u32 %v1152, 2147483648
        %v1240 = vxor.u32 %v1232, 2147483648
        %v1241 = vxor.u32 %v1234, 2147483648
        %v1242 = vmul.f32 %v1238, 1.442695
        %v1243 = vpow.pop %v1242
        %v1244 = vmul.f32 %v1239, 1.442695
        %v1245 = vpow.pop %v1244
        %v1246 = vmul.f32 %v1240, 1.442695
        %v1247 = vpow.pop %v1246
        %v1248 = vmul.f32 %v1241, 1.442695
        %v1249 = vpow.pop %v1248
        %v1250 = vadd.f32 %v1243, 1.0
        %v1251 = vadd.f32 %v1245, 1.0
        %v1252 = vadd.f32 %v1247, 1.0
        %v1253 = vadd.f32 %v1249, 1.0
        %v1254 = vrcp.pop %v1250
        %v1255 = vmul.f32 1.0, %v1254
        %v1256 = vrcp.pop %v1251
        %v1257 = vmul.f32 1.0, %v1256
        %v1258 = vrcp.pop %v1252
        %v1259 = vmul.f32 1.0, %v1258
        %v1260 = vrcp.pop %v1253
        %v1261 = vmul.f32 1.0, %v1260
        %1262 = vst [vmem:[%s279] sm:$0xff] %v1255
        %1263 = vst [vmem:[%s279 + $0x8] sm:$0xff] %v1257
        %1264 = vst [vmem:[%s279 + $0x10] sm:$0xff] %v1259
        %1265 = vst [vmem:[%s279 + $0x18] sm:$0xff] %v1261
        %s1266 = smul.u32 4, %s20
        %p1267 = scmp.lt.s32.totalorder %s1266, 7
        %s1268 = scalar_select %p1267, %s1266, 7
        %s1269 = smul.addr %s1268, 8
        %s1270 = scalar_lea.vmem %s5, %s1269
        // Predicated region
        $region49: #{decoder_forward.1} parent=39 // pred_check
          %p1271 = pneg %p153
        $region50: #{decoder_forward.1} parent=39 // pred_check_branch
          %1273 = sbr.rel (%p1271) target = $region52
        $region51: #{decoder_forward.1} parent=39 // pred_region
          %s1274 = smul.u32 4, %s20
        $region52: #{decoder_forward.1} parent=39 // pred_fallthru
          _
      $region40: #{decoder_forward.1} parent=5 // pred_fallthru
        _
      %p1275 = scmp.le.s32.totalorder 2, %s15
      // Predicated region
      $region53: #{decoder_forward.1} parent=5 // pred_check
        %p1276 = pneg %p1275
      $region54: #{decoder_forward.1} parent=5 // pred_check_branch
        %1278 = sbr.rel (%p1276) target = $region56
      $region55: #{decoder_forward.1} parent=5 // pred_region
        %s1279 = ssub.s32 %s15, 2
        // Predicated region
        $region57: #{decoder_forward.1} parent=55 // pred_check
          %p1280 = pneg %p159
        $region58: #{decoder_forward.1} parent=55 // pred_check_branch
          %1282 = sbr.rel (%p1280) target = $region60
        $region59: #{decoder_forward.1} parent=55 // pred_region
          %s1283 = smul.u32 4, %s21
          %p1284 = scmp.lt.s32.totalorder %s1283, 7
          %s1285 = scalar_select %p1284, %s1283, 7
          %s1286 = smul.addr %s1285, 8
          %s1287 = scalar_lea.vmem %s5, %s1286
        $region60: #{decoder_forward.1} parent=55 // pred_fallthru
          _
      $region56: #{decoder_forward.1} parent=5 // pred_fallthru
        _
    $region6: #{decoder_forward.1} parent=1 // loop_footer
      %s19 = sadd.s32 1, %s15
    $region7: #{decoder_forward.1} parent=1 // loop_footer_branch
      %14 = sbr.rel target = $region3
    $region8: #{decoder_forward.1} parent=1 // loop_exit
      _
    %1288 = vsyncpa [#allocation3], 1
    %s1289 = scalar_lea.sflag [#allocation3], 1
    %1290 = vsyncpa %s1289, 1
    %1291 = vsyncpa [#allocation5], 1
    %s1292 = scalar_lea.sflag [#allocation5], 1
    %1293 = vsyncpa %s1292, 1

</llo_original>
